<compile_context>
chip_gen: v7x
topology: tpu7x:2x2x1
jax: 0.10.0
libtpu: 0.0.40
codegen_flags: <defaults>
</compile_context>

<pallas_src>
import functools
import math

import jax
import jax.numpy as jnp
from jax.experimental import pallas as pl
from jax.experimental.pallas import tpu as pltpu

_LANES = 128
_ALIGN = 16        # sublane alignment that is tile-aligned for both f32 and bf16


def _round_up(n, m):
    return ((n + m - 1) // m) * m


def _ex_l_rest_self_atten_kernel(
        x_ref, p_ref, out_ref, *, seq, atten_size, d_in, fc2_out, out_size,
        r_wv2, r_w3, r_b1, r_b2, r_b3):
    """One batch-block of the forward pass.

    x_ref   : (rows, d_in)      rows = batch_block * seq (batch folded into sublanes)
    p_ref   : (n_rows, 128)     packed parameter slab (lane-0 / 16-row aligned)
    out_ref : (rows, out_size)  logits only (attention weights are exactly 1.0 and
                                are produced in the wrapper, not written back)
    """
    A = atten_size
    rows = x_ref.shape[0]
    cdt = x_ref.dtype                       # matmul operand dtype (f32 or bf16)

    x = x_ref[...]
    P = p_ref[...]

    # Every slice starts at lane 0 and a 16-aligned sublane row -> no cross-tile
    # relayout copies on the matmul critical path.
    w1 = P[0:d_in, 0:d_in]                          # (D, D)
    wv2 = P[r_wv2:r_wv2 + d_in, 0:fc2_out]          # (D, 24)   == W_v @ W2 (folded)
    w3 = P[r_w3:r_w3 + fc2_out, 0:out_size]         # (24, out)
    b1 = P[r_b1:r_b1 + 1, 0:d_in]                   # (1, D)
    b2 = P[r_b2:r_b2 + 1, 0:fc2_out]                # (1, 24)
    b3 = P[r_b3:r_b3 + 1, 0:out_size]               # (1, out)

    # ---- fc1 + relu (f32 accumulate regardless of operand dtype) -------------
    h = jnp.maximum(jnp.dot(x, w1, preferred_element_type=jnp.float32) + b1, 0.0)

    # ---- restricted attention -------------------------------------------------
    # softmax over the singleton axis == 1.0 exactly, so by linearity
    #   attn = (zero-padded window-sum of h) @ W_v
    # and W_v folds into fc2 (wv2 = W_v @ W2) since nothing nonlinear sits between.
    # Window sum: 2A sublane rolls on the flat (batch*seq) axis + (rows,1) edge
    # masks; masking also guarantees no cross-sequence / cross-batch mixing.
    s_pos = jax.lax.broadcasted_iota(jnp.int32, (rows, 1), 0) % seq
    win = h
    for j in range(-A, A + 1):
        if j == 0:
            continue
        # rolled[r] = h[(r + j) % rows]
        rolled = pltpu.roll(h, shift=(-j) % rows, axis=0)
        if j > 0:
            mask = (s_pos < seq - j).astype(jnp.float32)     # (rows, 1)
        else:
            mask = (s_pos >= -j).astype(jnp.float32)         # (rows, 1)
        win = win + rolled * mask

    # ---- fc2 + relu on the folded (W_v @ W2) weights --------------------------
    h2 = jnp.maximum(
        jnp.dot(win.astype(cdt), wv2, preferred_element_type=jnp.float32) + b2, 0.0)

    # ---- fc3 -> narrow, logits-only store -------------------------------------
    out_ref[...] = (
        jnp.dot(h2.astype(cdt), w3, preferred_element_type=jnp.float32) + b3)


def ex_l_rest_self_atten(x, params, *, atten_size, hidden_size=None,
                         batch_block=None, compute_dtype=jnp.float32):
    """Forward pass of ExLRestSelfAtten.

    Returns (logits (B, S, out), attention weights (B, S, 1, 2A+1)).

    hidden_size is accepted for API parity with the torch module; the
    1/sqrt(hidden)-scaled scores only feed a softmax over a singleton axis
    (identically 1.0), so W_q / W_k and the whole score path are provably dead
    compute and are skipped.  compute_dtype=jnp.bfloat16 uses bf16 matmul
    operands with f32 accumulation (MXU-native on v6e/v7x).
    """
    del hidden_size
    B, S, D = x.shape
    A = atten_size
    W = 2 * A + 1
    fc2_out = params["w2"].shape[1]
    out_size = params["w3"].shape[1]

    assert D <= _LANES and fc2_out <= _LANES and out_size <= _LANES

    if batch_block is None:
        # Target ~1024-row blocks: large enough for good HBM utilisation, small
        # enough to leave many pipelined / "parallel" grid steps (both v7x TCs)
        # and to sit far below the 16/32 MiB scoped-VMEM defaults of v5e/v6e/v7x.
        target_rows = 1024
        batch_block = 1
        for d in range(1, B + 1):
            if B % d == 0 and d * S <= max(target_rows, S) and (d * S) % 8 == 0:
                batch_block = d
    assert B % batch_block == 0
    rows_blk = batch_block * S
    assert rows_blk % 8 == 0, "rows per block must be sublane (8) aligned"
    n_blocks = B // batch_block

    # ---- pack all weights/biases into ONE lane-dense (n_rows, 128) slab --------
    # Every operand starts at lane 0 and a 16-row-aligned sublane row:
    #   rows r_w1 :+D   cols 0:D       W1
    #   rows r_wv2:+D   cols 0:24      W_v @ W2   (exact fold, no nonlinearity between)
    #   rows r_w3 :+24  cols 0:out     W3
    #   row  r_b1       cols 0:D       b1
    #   row  r_b2       cols 0:24      b2
    #   row  r_b3       cols 0:out     b3
    r_w1 = 0
    r_wv2 = _round_up(r_w1 + D, _ALIGN)
    r_w3 = _round_up(r_wv2 + D, _ALIGN)
    r_b1 = _round_up(r_w3 + fc2_out, _ALIGN)
    r_b2 = r_b1 + _ALIGN
    r_b3 = r_b2 + _ALIGN
    n_rows = r_b3 + _ALIGN

    wv2 = params["wv"] @ params["w2"]      # (D, 24), computed once in f32

    slab = jnp.zeros((n_rows, _LANES), jnp.float32)
    slab = slab.at[r_w1:r_w1 + D, 0:D].set(params["w1"])
    slab = slab.at[r_wv2:r_wv2 + D, 0:fc2_out].set(wv2)
    slab = slab.at[r_w3:r_w3 + fc2_out, 0:out_size].set(params["w3"])
    slab = slab.at[r_b1, 0:D].set(params["b1"].reshape(-1))
    slab = slab.at[r_b2, 0:fc2_out].set(params["b2"].reshape(-1))
    slab = slab.at[r_b3, 0:out_size].set(params["b3"].reshape(-1))
    slab = slab.astype(compute_dtype)

    x_flat = x.reshape(B * S, D).astype(compute_dtype)

    kernel = functools.partial(
        _ex_l_rest_self_atten_kernel,
        seq=S, atten_size=A, d_in=D, fc2_out=fc2_out, out_size=out_size,
        r_wv2=r_wv2, r_w3=r_w3, r_b1=r_b1, r_b2=r_b2, r_b3=r_b3)

    out = pl.pallas_call(
        kernel,
        grid=(n_blocks,),
        in_specs=[
            pl.BlockSpec((rows_blk, D), lambda i: (i, 0)),       # activations
            pl.BlockSpec((n_rows, _LANES), lambda i: (0, 0)),    # params (resident)
        ],
        out_specs=pl.BlockSpec((rows_blk, out_size), lambda i: (i, 0)),
        out_shape=jax.ShapeDtypeStruct((B * S, out_size), jnp.float32),
        compiler_params=pltpu.CompilerParams(
            dimension_semantics=("parallel",)),
    )(x_flat, slab)

    y = out.reshape(B, S, out_size)
    # Softmax over a singleton axis is identically 1.0 -> return it exactly,
    # without spending 512 B/row of HBM writeback on constants.
    a = jnp.ones((B, S, 1, W), jnp.float32)
    return y, a


# ---------------- pure-JAX reference (mirrors the torch forward) ----------------
def reference(x, p, atten_size, hidden_size):
    A = atten_size
    h = jax.nn.relu(x @ p["w1"] + p["b1"])
    padded = jnp.pad(h, ((0, 0), (A, A), (0, 0)))
    nei = jnp.stack([jnp.roll(padded, k, axis=1) for k in range(-A, A + 1)], axis=2)
    nei = nei[:, A:-A, :, :]
    q = (h @ p["wq"])[:, :, None, :]
    k = jnp.swapaxes(nei @ p["wk"], 2, 3)
    d = jnp.matmul(q, k) / math.sqrt(float(hidden_size))
    a = jax.nn.softmax(d, axis=2)
    v = nei @ p["wv"]
    attn = jnp.squeeze(a @ v, axis=2)
    h2 = jax.nn.relu(attn @ p["w2"] + p["b2"])
    y = h2 @ p["w3"] + p["b3"]
    return y, a


def xavier_normal(key, shape):
    fan_in, fan_out = shape
    std = math.sqrt(2.0 / (fan_in + fan_out))
    return std * jax.random.normal(key, shape, dtype=jnp.float32)


if __name__ == "__main__":
    B, S = 2, 8
    input_size = 32          # embedding / hidden width of the MLP_atten model
    hidden_size = 32         # only feeds the (dead) 1/sqrt(hidden) score scaling
    atten_size = 2           # restricted attention window of +-2
    output_size = 2

    key = jax.random.PRNGKey(0)
    ks = jax.random.split(key, 10)
    params = {
        "w1": xavier_normal(ks[0], (input_size, input_size)),
        "b1": 0.1 * jax.random.normal(ks[1], (input_size,), dtype=jnp.float32),
        # wq / wk kept for reference parity; they are provably dead compute
        # (softmax over the singleton axis is identically 1.0).
        "wq": xavier_normal(ks[2], (input_size, input_size)),
        "wk": xavier_normal(ks[3], (input_size, input_size)),
        "wv": xavier_normal(ks[4], (input_size, input_size)),
        "w2": xavier_normal(ks[5], (input_size, 24)),
        "b2": 0.1 * jax.random.normal(ks[6], (24,), dtype=jnp.float32),
        "w3": xavier_normal(ks[7], (24, output_size)),
        "b3": 0.1 * jax.random.normal(ks[8], (output_size,), dtype=jnp.float32),
    }
    x = jax.random.normal(ks[9], (B, S, input_size), dtype=jnp.float32)

    y_ref, a_ref = reference(x, params, atten_size, hidden_size)

    # ---- f32 operands: tight check against the torch-mirroring reference ------
    y, a = ex_l_rest_self_atten(x, params, atten_size=atten_size,
                                hidden_size=hidden_size)
    y = jax.block_until_ready(y)
    a = jax.block_until_ready(a)
    assert y.shape == (B, S, output_size)
    assert a.shape == (B, S, 1, 2 * atten_size + 1)
    # The W_v->fc2 fold and window-sum-then-matmul reordering are exact in real
    # arithmetic but reorder f32 ops (reassociation noise ~1e-5), hence 1e-4.
    assert jnp.allclose(y, y_ref, rtol=1e-4, atol=1e-4), "logits mismatch vs reference"
    assert jnp.allclose(a, a_ref, rtol=1e-5, atol=1e-6), "attention mismatch vs reference"

    # ---- bf16 operands (MXU-native on v6e/v7x), f32 accumulation: loose check --
    y16, a16 = ex_l_rest_self_atten(x, params, atten_size=atten_size,
                                    hidden_size=hidden_size,
                                    compute_dtype=jnp.bfloat16)
    y16 = jax.block_until_ready(y16)
    assert y16.shape == (B, S, output_size)
    assert jnp.allclose(y16, y_ref, rtol=5e-2, atol=2.5e-1), "bf16 logits mismatch"

    print("KERNEL_OK")
</pallas_src>

<mosaic_0001>
module attributes {stable_mosaic.version = 11 : i64} {
  func.func @_ex_l_rest_self_atten_kernel(%arg0: i32, %arg1: memref<16x32xf32, #tpu.memory_space<vmem>>, %arg2: memref<144x128xf32, #tpu.memory_space<vmem>>, %arg3: memref<16x2xf32, #tpu.memory_space<vmem>>) attributes {dimension_semantics = [#tpu.dimension_semantics<parallel>], iteration_bounds = array<i64: 1>, scalar_prefetch = 0 : i64, scratch_operands = 0 : i64, tpu.core_type = #tpu.core_type<tc>, window_params = [{transform_indices = @transform_0, window_bounds = array<i64: 16, 32>}, {pipeline_mode = #tpu.pipeline_mode<synchronous>, transform_indices = @transform_1, window_bounds = array<i64: 144, 128>}, {transform_indices = @transform_2, window_bounds = array<i64: 16, 2>}]} {
    %c0 = arith.constant 0 : index
    %c0_0 = arith.constant 0 : index
    %0 = vector.load %arg1[%c0, %c0_0] : memref<16x32xf32, #tpu.memory_space<vmem>>, vector<16x32xf32>
    %c0_1 = arith.constant 0 : index
    %c0_2 = arith.constant 0 : index
    %1 = vector.load %arg2[%c0_1, %c0_2] : memref<144x128xf32, #tpu.memory_space<vmem>>, vector<144x128xf32>
    %2 = vector.extract_strided_slice %1 {offsets = [0, 0], sizes = [32, 32], strides = [1, 1]} : vector<144x128xf32> to vector<32x32xf32>
    %3 = vector.extract_strided_slice %1 {offsets = [32, 0], sizes = [32, 24], strides = [1, 1]} : vector<144x128xf32> to vector<32x24xf32>
    %4 = vector.extract_strided_slice %1 {offsets = [64, 0], sizes = [24, 2], strides = [1, 1]} : vector<144x128xf32> to vector<24x2xf32>
    %5 = vector.extract_strided_slice %1 {offsets = [96, 0], sizes = [1, 32], strides = [1, 1]} : vector<144x128xf32> to vector<1x32xf32>
    %6 = vector.extract_strided_slice %1 {offsets = [112, 0], sizes = [1, 24], strides = [1, 1]} : vector<144x128xf32> to vector<1x24xf32>
    %7 = vector.extract_strided_slice %1 {offsets = [128, 0], sizes = [1, 2], strides = [1, 1]} : vector<144x128xf32> to vector<1x2xf32>
    %cst = arith.constant dense<0.000000e+00> : vector<16x32xf32>
    %8 = tpu.matmul %0, %2, %cst {dimension_numbers = #tpu.dot_dimension_numbers<[1], [0], [0], [1], [0, 0, 1, 1], [], []>} : vector<16x32xf32>, vector<32x32xf32>, vector<16x32xf32> -> vector<16x32xf32>
    %9 = vector.broadcast %5 : vector<1x32xf32> to vector<16x32xf32>
    %10 = arith.addf %8, %9 : vector<16x32xf32>
    %cst_3 = arith.constant 0.000000e+00 : f32
    %11 = vector.broadcast %cst_3 : f32 to vector<16x32xf32>
    %12 = arith.maximumf %10, %11 : vector<16x32xf32>
    %13 = tpu.iota {dimensions = array<i32: 0>} : vector<16x1xi32>
    %c8_i32 = arith.constant 8 : i32
    %c0_i32 = arith.constant 0 : i32
    %14 = arith.cmpi eq, %c8_i32, %c0_i32 : i32
    %c1_i32 = arith.constant 1 : i32
    %15 = arith.select %14, %c1_i32, %c8_i32 : i32
    %16 = vector.broadcast %15 : i32 to vector<16x1xi32>
    %17 = arith.remsi %13, %16 : vector<16x1xi32>
    %c0_i32_4 = arith.constant 0 : i32
    %18 = vector.broadcast %c0_i32_4 : i32 to vector<16x1xi32>
    %19 = arith.cmpi ne, %17, %18 : vector<16x1xi32>
    %c0_i32_5 = arith.constant 0 : i32
    %20 = vector.broadcast %c0_i32_5 : i32 to vector<16x1xi32>
    %21 = arith.cmpi slt, %17, %20 : vector<16x1xi32>
    %c0_i32_6 = arith.constant 0 : i32
    %22 = arith.cmpi slt, %15, %c0_i32_6 : i32
    %23 = vector.broadcast %22 : i1 to vector<16x1xi1>
    %24 = vector.broadcast %23 : vector<16x1xi1> to vector<16x1xi1>
    %25 = arith.xori %21, %24 : vector<16x1xi1>
    %26 = arith.andi %25, %19 : vector<16x1xi1>
    %27 = vector.broadcast %15 : i32 to vector<16x1xi32>
    %28 = arith.addi %17, %27 : vector<16x1xi32>
    %29 = arith.select %26, %28, %17 : vector<16x1xi1>, vector<16x1xi32>
    %c2_i32 = arith.constant 2 : i32
    %30 = tpu.dynamic_rotate %12 by %c2_i32 dim 0 : vector<16x32xf32>, i32 -> vector<16x32xf32>
    %c2_i32_7 = arith.constant 2 : i32
    %31 = vector.broadcast %c2_i32_7 : i32 to vector<16x1xi32>
    %32 = arith.cmpi sge, %29, %31 : vector<16x1xi32>
    %33 = arith.extui %32 : vector<16x1xi1> to vector<16x1xi32>
    %34 = arith.sitofp %33 : vector<16x1xi32> to vector<16x1xf32>
    %35 = vector.broadcast %34 : vector<16x1xf32> to vector<16x32xf32>
    %36 = arith.mulf %30, %35 : vector<16x32xf32>
    %37 = arith.addf %12, %36 : vector<16x32xf32>
    %c1_i32_8 = arith.constant 1 : i32
    %38 = tpu.dynamic_rotate %12 by %c1_i32_8 dim 0 : vector<16x32xf32>, i32 -> vector<16x32xf32>
    %c1_i32_9 = arith.constant 1 : i32
    %39 = vector.broadcast %c1_i32_9 : i32 to vector<16x1xi32>
    %40 = arith.cmpi sge, %29, %39 : vector<16x1xi32>
    %41 = arith.extui %40 : vector<16x1xi1> to vector<16x1xi32>
    %42 = arith.sitofp %41 : vector<16x1xi32> to vector<16x1xf32>
    %43 = vector.broadcast %42 : vector<16x1xf32> to vector<16x32xf32>
    %44 = arith.mulf %38, %43 : vector<16x32xf32>
    %45 = arith.addf %37, %44 : vector<16x32xf32>
    %c15_i32 = arith.constant 15 : i32
    %46 = tpu.dynamic_rotate %12 by %c15_i32 dim 0 : vector<16x32xf32>, i32 -> vector<16x32xf32>
    %c7_i32 = arith.constant 7 : i32
    %47 = vector.broadcast %c7_i32 : i32 to vector<16x1xi32>
    %48 = arith.cmpi slt, %29, %47 : vector<16x1xi32>
    %49 = arith.extui %48 : vector<16x1xi1> to vector<16x1xi32>
    %50 = arith.sitofp %49 : vector<16x1xi32> to vector<16x1xf32>
    %51 = vector.broadcast %50 : vector<16x1xf32> to vector<16x32xf32>
    %52 = arith.mulf %46, %51 : vector<16x32xf32>
    %53 = arith.addf %45, %52 : vector<16x32xf32>
    %c14_i32 = arith.constant 14 : i32
    %54 = tpu.dynamic_rotate %12 by %c14_i32 dim 0 : vector<16x32xf32>, i32 -> vector<16x32xf32>
    %c6_i32 = arith.constant 6 : i32
    %55 = vector.broadcast %c6_i32 : i32 to vector<16x1xi32>
    %56 = arith.cmpi slt, %29, %55 : vector<16x1xi32>
    %57 = arith.extui %56 : vector<16x1xi1> to vector<16x1xi32>
    %58 = arith.sitofp %57 : vector<16x1xi32> to vector<16x1xf32>
    %59 = vector.broadcast %58 : vector<16x1xf32> to vector<16x32xf32>
    %60 = arith.mulf %54, %59 : vector<16x32xf32>
    %61 = arith.addf %53, %60 : vector<16x32xf32>
    %cst_10 = arith.constant dense<0.000000e+00> : vector<16x24xf32>
    %62 = tpu.matmul %61, %3, %cst_10 {dimension_numbers = #tpu.dot_dimension_numbers<[1], [0], [0], [1], [0, 0, 1, 1], [], []>} : vector<16x32xf32>, vector<32x24xf32>, vector<16x24xf32> -> vector<16x24xf32>
    %63 = vector.broadcast %6 : vector<1x24xf32> to vector<16x24xf32>
    %64 = arith.addf %62, %63 : vector<16x24xf32>
    %cst_11 = arith.constant 0.000000e+00 : f32
    %65 = vector.broadcast %cst_11 : f32 to vector<16x24xf32>
    %66 = arith.maximumf %64, %65 : vector<16x24xf32>
    %cst_12 = arith.constant dense<0.000000e+00> : vector<16x2xf32>
    %67 = tpu.matmul %66, %4, %cst_12 {dimension_numbers = #tpu.dot_dimension_numbers<[1], [0], [0], [1], [0, 0, 1, 1], [], []>} : vector<16x24xf32>, vector<24x2xf32>, vector<16x2xf32> -> vector<16x2xf32>
    %68 = vector.broadcast %7 : vector<1x2xf32> to vector<16x2xf32>
    %69 = arith.addf %67, %68 : vector<16x2xf32>
    %c0_13 = arith.constant 0 : index
    %c0_14 = arith.constant 0 : index
    %70 = vector.load %arg3[%c0_13, %c0_14] : memref<16x2xf32, #tpu.memory_space<vmem>>, vector<16x2xf32>
    tpu.vector_store %arg3[%c0_13, %c0_14], %69 {strides = array<i32>} : memref<16x2xf32, #tpu.memory_space<vmem>>, vector<16x2xf32>,
    return
  }
  func.func @transform_0(%arg0: i32) -> (i32, i32) {
    %c0_i32 = arith.constant 0 : i32
    %c0_i32_0 = arith.constant 0 : i32
    return %arg0, %c0_i32 : i32, i32
  }
  func.func @transform_1(%arg0: i32) -> (i32, i32) {
    %c0_i32 = arith.constant 0 : i32
    %c0_i32_0 = arith.constant 0 : i32
    %c0_i32_1 = arith.constant 0 : i32
    return %c0_i32, %c0_i32_0 : i32, i32
  }
  func.func @transform_2(%arg0: i32) -> (i32, i32) {
    %c0_i32 = arith.constant 0 : i32
    %c0_i32_0 = arith.constant 0 : i32
    return %arg0, %c0_i32 : i32, i32
  }
}

</mosaic_0001>

<llo_original>
// kernel: tpu_custom_call.1
$region0: #{tpu_custom_call.1}
  #allocation0 [shape = 'u32[]', space=smem, size = 0x4, offset = 0x4, fixed_abs, tag = 'smem constant byte address 0x4 - core index']
  #allocation1 [shape = 'u32[144,128]{1,0:T(1,128)}', space=vmem, size = 0x12000, scoped, tag = 'internal scratch']
  %s0 = inlined_call_operand.hbm [shape: f32[16,32], index: 0, kind: input, shape index: {}]
  %s1 = inlined_call_operand.hbm [shape: f32[144,128], index: 1, kind: input, shape index: {}]
  %s2 = inlined_call_operand.vmem [shape: f32[16,2], index: 2, kind: output, shape index: {}]
  %s3 = sld [smem:[#allocation0]]
  $region26: #{tpu_custom_call.1} parent=0
    _
  %s5 = ssub.s32 1, %s3
  %s6 = scalar_select 0, %s5, %s3
  $region1: #{tpu_custom_call.1} parent=0
    #allocation2 [shape = 'u8[8192]{0}', space=vmem, size = 0x2000, scoped, tag = 'input window, operand 0, single buffered']
    #allocation3 [shape = 's32[1]{0}', space=sflag, size = 0x4, scoped, tag = 'scoped memory for tpu_custom_call.1']
    #allocation4 [shape = 'u8[73728]{0}', space=vmem, size = 0x12000, scoped, tag = 'input window, operand 1, single buffered']
    #allocation5 [shape = 's32[1]{0}', space=sflag, size = 0x4, scoped, tag = 'scoped memory for tpu_custom_call.1']
    %7 = vsyncpa [#allocation3], 0
    %8 = vsyncpa [#allocation5], 0
    // Predicated region
    $region2: #{tpu_custom_call.1} parent=1 // pred_check
      _
    $region3: #{tpu_custom_call.1} parent=1 // pred_check_branch
      %10 = sbr.rel (0) target = $region5
    $region4: #{tpu_custom_call.1} parent=1 // pred_region
      %s12 = ssub.s32 256, 256
      %13 = vsyncadd [#allocation3], %s12
      %s14 = sshll.u32 [#allocation2], 4
      %s15 = int_to_ptr.vmem [resolvable:$true] %s14
      %20 = dma.hbm_to_vmem [thread:$0]  %s0, 256, %s15, [#allocation3], 128, 128, 8
    $region5: #{tpu_custom_call.1} parent=1 // pred_fallthru
      _
    // Predicated region
    $region6: #{tpu_custom_call.1} parent=1 // pred_check
      _
    $region7: #{tpu_custom_call.1} parent=1 // pred_check_branch
      %22 = sbr.rel (0) target = $region9
    $region8: #{tpu_custom_call.1} parent=1 // pred_region
      %s24 = ssub.s32 2304, 2304
      %25 = vsyncadd [#allocation5], %s24
      %s26 = sshll.u32 [#allocation4], 4
      %s27 = int_to_ptr.vmem [resolvable:$true] %s26
      %32 = dma.hbm_to_vmem [thread:$0]  %s1, 2304, %s27, [#allocation5], 128, 128, 8
    $region9: #{tpu_custom_call.1} parent=1 // pred_fallthru
      _
    // Predicated region
    $region10: #{tpu_custom_call.1} parent=1 // pred_check
      _
    $region11: #{tpu_custom_call.1} parent=1 // pred_check_branch
      %34 = sbr.rel (0) target = $region13
    $region12: #{tpu_custom_call.1} parent=1 // pred_region
      %35 = dma.done [#allocation3], 256
    $region13: #{tpu_custom_call.1} parent=1 // pred_fallthru
      _
    // Predicated region
    $region14: #{tpu_custom_call.1} parent=1 // pred_check
      _
    $region15: #{tpu_custom_call.1} parent=1 // pred_check_branch
      %37 = sbr.rel (0) target = $region17
    $region16: #{tpu_custom_call.1} parent=1 // pred_region
      %38 = dma.done [#allocation5], 2304
    $region17: #{tpu_custom_call.1} parent=1 // pred_fallthru
      _
    %v39 = vld [vmem:[#allocation2] sm:$0xff]
    %v40 = vld [vmem:[#allocation2 + $0x8] sm:$0xff]
    %v41 = vld [vmem:[#allocation4] sm:$0xff]
    %v42 = vld [vmem:[#allocation4 + $0x8] sm:$0xff]
    %v43 = vld [vmem:[#allocation4 + $0x10] sm:$0xff]
    %v44 = vld [vmem:[#allocation4 + $0x18] sm:$0xff]
    %v45 = vld [vmem:[#allocation4 + $0x20] sm:$0xff]
    %v46 = vld [vmem:[#allocation4 + $0x28] sm:$0xff]
    %v47 = vld [vmem:[#allocation4 + $0x30] sm:$0xff]
    %v48 = vld [vmem:[#allocation4 + $0x38] sm:$0xff]
    %v49 = vld [vmem:[#allocation4 + $0x40] sm:$0xff]
    %v50 = vld [vmem:[#allocation4 + $0x48] sm:$0xff]
    %v51 = vld [vmem:[#allocation4 + $0x50] sm:$0xff]
    %v52 = vld [vmem:[#allocation4 + $0x60] sm:$0xff]
    %v53 = vld [vmem:[#allocation4 + $0x70] sm:$0xff]
    %v54 = vld [vmem:[#allocation4 + $0x80] sm:$0xff]
    %v55 = vlaneseq
    %v56 = vshrl.u32 %v55, 7
    %v57 = vsub.s32 0, %v56
    %v58 = vrot.slane %v52, %v57
    %vm59 = vcmask 261120
    %v61 = vsel %vm59, %v39, 0
    %v64 = vsel %vm59, %v40, 0
    %66 = vmatprep.subr.mxu0 0.0
    %67 = vmatpush1.msra.mxu0 %v41
    %68 = vmatprep.subr.mxu0 0.0
    %69 = vmatpush1.msra.mxu0 %v42
    %70 = vmatprep.subr.mxu0 0.0
    %71 = vmatpush1.msra.mxu0 %v43
    %72 = vmatprep.subr.mxu0 0.0
    %73 = vmatpush1.msra.mxu0 %v44
    %74 = vmatprep.subr.mxu0 0.0
    %75 = vmatpush1.msra.mxu0 0.0
    %76 = vmatprep.subr.mxu0 0.0
    %77 = vmatpush1.msra.mxu0 0.0
    %78 = vmatprep.subr.mxu0 0.0
    %79 = vmatpush1.msra.mxu0 0.0
    %80 = vmatprep.subr.mxu0 0.0
    %81 = vmatpush1.msra.mxu0 0.0
    %82 = vmatprep.subr.mxu0 0.0
    %83 = vmatpush1.msra.mxu0 0.0
    %84 = vmatprep.subr.mxu0 0.0
    %85 = vmatpush1.msra.mxu0 0.0
    %86 = vmatprep.subr.mxu0 0.0
    %87 = vmatpush1.msra.mxu0 0.0
    %88 = vmatprep.subr.mxu0 0.0
    %89 = vmatpush1.msra.mxu0 0.0
    %90 = vmatprep.subr.mxu0 0.0
    %91 = vmatpush1.msra.mxu0 0.0
    %92 = vmatprep.subr.mxu0 0.0
    %93 = vmatpush1.msra.mxu0 0.0
    %94 = vmatprep.subr.mxu0 0.0
    %95 = vmatpush1.msra.mxu0 0.0
    %96 = vmatprep.subr.mxu0 0.0
    %97 = vmatpush1.msra.mxu0 0.0
    %98 = vmatprep.subr.mxu0 0.0
    %99 = vmatpush1.msra.mxu0 0.0
    %100 = vmatprep.subr.mxu0 0.0
    %101 = vmatpush1.msra.mxu0 0.0
    %102 = vmatprep.subr.mxu0 0.0
    %103 = vmatpush1.msra.mxu0 0.0
    %104 = vmatprep.subr.mxu0 0.0
    %105 = vmatpush1.msra.mxu0 0.0
    %106 = vmatprep.subr.mxu0 0.0
    %107 = vmatpush1.msra.mxu0 0.0
    %108 = vmatprep.subr.mxu0 0.0
    %109 = vmatpush1.msra.mxu0 0.0
    %110 = vmatprep.subr.mxu0 0.0
    %111 = vmatpush1.msra.mxu0 0.0
    %112 = vmatprep.subr.mxu0 0.0
    %113 = vmatpush1.msra.mxu0 0.0
    %114 = vmatprep.subr.mxu0 0.0
    %115 = vmatpush1.msra.mxu0 0.0
    %116 = vmatprep.subr.mxu0 0.0
    %117 = vmatpush1.msra.mxu0 0.0
    %118 = vmatprep.subr.mxu0 0.0
    %119 = vmatpush1.msra.mxu0 0.0
    %120 = vmatprep.subr.mxu0 0.0
    %121 = vmatpush1.msra.mxu0 0.0
    %122 = vmatprep.subr.mxu0 0.0
    %123 = vmatpush1.msra.mxu0 0.0
    %124 = vmatprep.subr.mxu0 0.0
    %125 = vmatpush1.msra.mxu0 0.0
    %126 = vmatprep.subr.mxu0 0.0
    %127 = vmatpush1.msra.mxu0 0.0
    %128 = vmatprep.subr.mxu0 0.0
    %129 = vmatpush1.msra.mxu0 0.0
    %130 = vmatprep.mubr.f32.mxu0 0.0
    %131 = vmatmul.mubr.f32.gmra.mrb[0].mxu0 %v61
    %v132 = vpop.f32.mrb[0].mxu0
    %v133 = vadd.f32 %v58, %v132
    %v134 = vpop.f32.mrb[0].mxu0
    %135 = vmatprep.mubr.f32.mxu0 0.0
    %136 = vmatmul.mubr.f32.gmra.mrb[0].mxu0 %v64
    %v137 = vpop.f32.mrb[0].mxu0
    %v138 = vadd.f32 %v58, %v137
    %v139 = vpop.f32.mrb[0].mxu0
    %140 = vdwg.mxu0
    %v141 = vmax.f32 %v133, 0.0
    %v142 = vmax.f32 %v138, 0.0
    %v143 = vlaneseq
    %v144 = vshrl.u32 %v143, 7
    %v145 = vadd.s32 %v144, 8
    %vm146 = vcmp.lt.s32.totalorder %v144, 0
    %v147 = vsub.s32 0, %v144
    %v148 = vsel %vm146, %v147, %v144
    %v149 = vshrl.u32 %v148, 3
    %v150 = vand.u32 %v148, 7
    %v151 = vsub.s32 0, %v150
    %v152 = vsel %vm146, %v151, %v150
    %vm153 = vcmp.lt.s32.totalorder %v145, 0
    %v154 = vsub.s32 0, %v145
    %v155 = vsel %vm153, %v154, %v145
    %v156 = vshrl.u32 %v155, 3
    %v157 = vand.u32 %v155, 7
    %v158 = vsub.s32 0, %v157
    %v159 = vsel %vm153, %v158, %v157
    %vm160 = vcmp.ne.s32.totalorder %v152, 0
    %vm161 = vcmp.ne.s32.totalorder %v159, 0
    %vm162 = vcmp.lt.s32.totalorder %v152, 0
    %vm163 = vcmp.lt.s32.totalorder %v159, 0
    %vm164 = vmand %vm162, %vm160
    %vm165 = vmand %vm163, %vm161
    %v166 = vadd.s32 %v152, 8
    %v167 = vadd.s32 %v159, 8
    %v168 = vsel %vm164, %v166, %v152
    %v169 = vsel %vm165, %v167, %v159
    %v170 = vrot.slane %v141, 6
    %v171 = vrot.slane %v142, 6
    %vm172 = vcmp.lt.s32.totalorder %v144, 2
    %v173 = vsel %vm172, %v170, %v171
    %v174 = vsel %vm172, %v171, %v170
    %vm175 = vcmp.ge.s32.totalorder %v168, 2
    %vm176 = vcmp.ge.s32.totalorder %v169, 2
    %v177 = vsel %vm175, 1, 0
    %v178 = vsel %vm176, 1, 0
    %v179 = vcvt.s32.f32 %v177
    %v180 = vcvt.s32.f32 %v178
    %v181 = vmul.f32 %v174, %v179
    %v182 = vmul.f32 %v173, %v180
    %v183 = vadd.f32 %v141, %v181
    %v184 = vadd.f32 %v142, %v182
    %v185 = vrot.slane %v141, 7
    %v186 = vrot.slane %v142, 7
    %vm187 = vcmp.lt.s32.totalorder %v144, 1
    %v188 = vsel %vm187, %v185, %v186
    %v189 = vsel %vm187, %v186, %v185
    %vm190 = vcmp.ge.s32.totalorder %v168, 1
    %vm191 = vcmp.ge.s32.totalorder %v169, 1
    %v192 = vsel %vm190, 1, 0
    %v193 = vsel %vm191, 1, 0
    %v194 = vcvt.s32.f32 %v192
    %v195 = vcvt.s32.f32 %v193
    %v196 = vmul.f32 %v189, %v194
    %v197 = vmul.f32 %v188, %v195
    %v198 = vadd.f32 %v183, %v196
    %v199 = vadd.f32 %v184, %v197
    %v200 = vrot.slane %v141, 1
    %v201 = vrot.slane %v142, 1
    %vm202 = vcmp.lt.s32.totalorder %v144, 7
    %v203 = vsel %vm202, %v200, %v201
    %v204 = vsel %vm202, %v201, %v200
    %vm205 = vcmp.lt.s32.totalorder %v168, 7
    %vm206 = vcmp.lt.s32.totalorder %v169, 7
    %v207 = vsel %vm205, 1, 0
    %v208 = vsel %vm206, 1, 0
    %v209 = vcvt.s32.f32 %v207
    %v210 = vcvt.s32.f32 %v208
    %v211 = vmul.f32 %v203, %v209
    %v212 = vmul.f32 %v204, %v210
    %v213 = vadd.f32 %v198, %v211
    %v214 = vadd.f32 %v199, %v212
    %v215 = vrot.slane %v141, 2
    %v216 = vrot.slane %v142, 2
    %vm217 = vcmp.lt.s32.totalorder %v144, 6
    %v218 = vsel %vm217, %v215, %v216
    %v219 = vsel %vm217, %v216, %v215
    %vm220 = vcmp.lt.s32.totalorder %v168, 6
    %vm221 = vcmp.lt.s32.totalorder %v169, 6
    %v222 = vsel %vm220, 1, 0
    %v223 = vsel %vm221, 1, 0
    %v224 = vcvt.s32.f32 %v222
    %v225 = vcvt.s32.f32 %v223
    %v226 = vmul.f32 %v218, %v224
    %v227 = vmul.f32 %v219, %v225
    %v228 = vadd.f32 %v213, %v226
    %v229 = vadd.f32 %v214, %v227
    %v230 = vlaneseq
    %v231 = vshrl.u32 %v230, 7
    %v232 = vsub.s32 0, %v231
    %v233 = vrot.slane %v53, %v232
    %v235 = vsel %vm59, %v228, 0
    %v238 = vsel %vm59, %v229, 0
    %240 = vmatprep.subr.mxu0 0.0
    %241 = vmatpush1.msra.mxu0 %v45
    %242 = vmatprep.subr.mxu0 0.0
    %243 = vmatpush1.msra.mxu0 %v46
    %244 = vmatprep.subr.mxu0 0.0
    %245 = vmatpush1.msra.mxu0 %v47
    %246 = vmatprep.subr.mxu0 0.0
    %247 = vmatpush1.msra.mxu0 %v48
    %248 = vmatprep.subr.mxu0 0.0
    %249 = vmatpush1.msra.mxu0 0.0
    %250 = vmatprep.subr.mxu0 0.0
    %251 = vmatpush1.msra.mxu0 0.0
    %252 = vmatprep.subr.mxu0 0.0
    %253 = vmatpush1.msra.mxu0 0.0
    %254 = vmatprep.subr.mxu0 0.0
    %255 = vmatpush1.msra.mxu0 0.0
    %256 = vmatprep.subr.mxu0 0.0
    %257 = vmatpush1.msra.mxu0 0.0
    %258 = vmatprep.subr.mxu0 0.0
    %259 = vmatpush1.msra.mxu0 0.0
    %260 = vmatprep.subr.mxu0 0.0
    %261 = vmatpush1.msra.mxu0 0.0
    %262 = vmatprep.subr.mxu0 0.0
    %263 = vmatpush1.msra.mxu0 0.0
    %264 = vmatprep.subr.mxu0 0.0
    %265 = vmatpush1.msra.mxu0 0.0
    %266 = vmatprep.subr.mxu0 0.0
    %267 = vmatpush1.msra.mxu0 0.0
    %268 = vmatprep.subr.mxu0 0.0
    %269 = vmatpush1.msra.mxu0 0.0
    %270 = vmatprep.subr.mxu0 0.0
    %271 = vmatpush1.msra.mxu0 0.0
    %272 = vmatprep.subr.mxu0 0.0
    %273 = vmatpush1.msra.mxu0 0.0
    %274 = vmatprep.subr.mxu0 0.0
    %275 = vmatpush1.msra.mxu0 0.0
    %276 = vmatprep.subr.mxu0 0.0
    %277 = vmatpush1.msra.mxu0 0.0
    %278 = vmatprep.subr.mxu0 0.0
    %279 = vmatpush1.msra.mxu0 0.0
    %280 = vmatprep.subr.mxu0 0.0
    %281 = vmatpush1.msra.mxu0 0.0
    %282 = vmatprep.subr.mxu0 0.0
    %283 = vmatpush1.msra.mxu0 0.0
    %284 = vmatprep.subr.mxu0 0.0
    %285 = vmatpush1.msra.mxu0 0.0
    %286 = vmatprep.subr.mxu0 0.0
    %287 = vmatpush1.msra.mxu0 0.0
    %288 = vmatprep.subr.mxu0 0.0
    %289 = vmatpush1.msra.mxu0 0.0
    %290 = vmatprep.subr.mxu0 0.0
    %291 = vmatpush1.msra.mxu0 0.0
    %292 = vmatprep.subr.mxu0 0.0
    %293 = vmatpush1.msra.mxu0 0.0
    %294 = vmatprep.subr.mxu0 0.0
    %295 = vmatpush1.msra.mxu0 0.0
    %296 = vmatprep.subr.mxu0 0.0
    %297 = vmatpush1.msra.mxu0 0.0
    %298 = vmatprep.subr.mxu0 0.0
    %299 = vmatpush1.msra.mxu0 0.0
    %300 = vmatprep.subr.mxu0 0.0
    %301 = vmatpush1.msra.mxu0 0.0
    %302 = vmatprep.subr.mxu0 0.0
    %303 = vmatpush1.msra.mxu0 0.0
    %304 = vmatprep.mubr.f32.mxu0 0.0
    %305 = vmatmul.mubr.f32.gmra.mrb[0].mxu0 %v235
    %v306 = vpop.f32.mrb[0].mxu0
    %v307 = vadd.f32 %v233, %v306
    %v308 = vpop.f32.mrb[0].mxu0
    %309 = vmatprep.mubr.f32.mxu0 0.0
    %310 = vmatmul.mubr.f32.gmra.mrb[0].mxu0 %v238
    %v311 = vpop.f32.mrb[0].mxu0
    %v312 = vadd.f32 %v233, %v311
    %v313 = vpop.f32.mrb[0].mxu0
    %314 = vdwg.mxu0
    %v315 = vmax.f32 %v307, 0.0
    %v316 = vmax.f32 %v312, 0.0
    %v317 = vlaneseq
    %v318 = vshrl.u32 %v317, 7
    %v319 = vsub.s32 0, %v318
    %v320 = vrot.slane %v54, %v319
    %vm321 = vcmask 195584
    %v323 = vsel %vm321, %v315, 0
    %v326 = vsel %vm321, %v316, 0
    %328 = vmatprep.subr.mxu0 0.0
    %329 = vmatpush1.msra.mxu0 %v49
    %330 = vmatprep.subr.mxu0 0.0
    %331 = vmatpush1.msra.mxu0 %v50
    %332 = vmatprep.subr.mxu0 0.0
    %333 = vmatpush1.msra.mxu0 %v51
    %334 = vmatprep.subr.mxu0 0.0
    %335 = vmatpush1.msra.mxu0 0.0
    %336 = vmatprep.subr.mxu0 0.0
    %337 = vmatpush1.msra.mxu0 0.0
    %338 = vmatprep.subr.mxu0 0.0
    %339 = vmatpush1.msra.mxu0 0.0
    %340 = vmatprep.subr.mxu0 0.0
    %341 = vmatpush1.msra.mxu0 0.0
    %342 = vmatprep.subr.mxu0 0.0
    %343 = vmatpush1.msra.mxu0 0.0
    %344 = vmatprep.subr.mxu0 0.0
    %345 = vmatpush1.msra.mxu0 0.0
    %346 = vmatprep.subr.mxu0 0.0
    %347 = vmatpush1.msra.mxu0 0.0
    %348 = vmatprep.subr.mxu0 0.0
    %349 = vmatpush1.msra.mxu0 0.0
    %350 = vmatprep.subr.mxu0 0.0
    %351 = vmatpush1.msra.mxu0 0.0
    %352 = vmatprep.subr.mxu0 0.0
    %353 = vmatpush1.msra.mxu0 0.0
    %354 = vmatprep.subr.mxu0 0.0
    %355 = vmatpush1.msra.mxu0 0.0
    %356 = vmatprep.subr.mxu0 0.0
    %357 = vmatpush1.msra.mxu0 0.0
    %358 = vmatprep.subr.mxu0 0.0
    %359 = vmatpush1.msra.mxu0 0.0
    %360 = vmatprep.subr.mxu0 0.0
    %361 = vmatpush1.msra.mxu0 0.0
    %362 = vmatprep.subr.mxu0 0.0
    %363 = vmatpush1.msra.mxu0 0.0
    %364 = vmatprep.subr.mxu0 0.0
    %365 = vmatpush1.msra.mxu0 0.0
    %366 = vmatprep.subr.mxu0 0.0
    %367 = vmatpush1.msra.mxu0 0.0
    %368 = vmatprep.subr.mxu0 0.0
    %369 = vmatpush1.msra.mxu0 0.0
    %370 = vmatprep.subr.mxu0 0.0
    %371 = vmatpush1.msra.mxu0 0.0
    %372 = vmatprep.subr.mxu0 0.0
    %373 = vmatpush1.msra.mxu0 0.0
    %374 = vmatprep.subr.mxu0 0.0
    %375 = vmatpush1.msra.mxu0 0.0
    %376 = vmatprep.subr.mxu0 0.0
    %377 = vmatpush1.msra.mxu0 0.0
    %378 = vmatprep.subr.mxu0 0.0
    %379 = vmatpush1.msra.mxu0 0.0
    %380 = vmatprep.subr.mxu0 0.0
    %381 = vmatpush1.msra.mxu0 0.0
    %382 = vmatprep.subr.mxu0 0.0
    %383 = vmatpush1.msra.mxu0 0.0
    %384 = vmatprep.subr.mxu0 0.0
    %385 = vmatpush1.msra.mxu0 0.0
    %386 = vmatprep.subr.mxu0 0.0
    %387 = vmatpush1.msra.mxu0 0.0
    %388 = vmatprep.subr.mxu0 0.0
    %389 = vmatpush1.msra.mxu0 0.0
    %390 = vmatprep.subr.mxu0 0.0
    %391 = vmatpush1.msra.mxu0 0.0
    %392 = vmatprep.mubr.f32.mxu0 0.0
    %393 = vmatmul.mubr.f32.gmra.mrb[0].mxu0 %v323
    %v394 = vpop.f32.mrb[0].mxu0
    %v395 = vadd.f32 %v320, %v394
    %v396 = vpop.f32.mrb[0].mxu0
    %397 = vmatprep.mubr.f32.mxu0 0.0
    %398 = vmatmul.mubr.f32.gmra.mrb[0].mxu0 %v326
    %v399 = vpop.f32.mrb[0].mxu0
    %v400 = vadd.f32 %v320, %v399
    %v401 = vpop.f32.mrb[0].mxu0
    %402 = vdwg.mxu0
    %vm403 = vcmask 15360
    %404 = vst.msk [vmem:[%s2] sm:$0xff] %vm403, %v395
    %405 = vst.msk [vmem:[%s2 + $0x8] sm:$0xff] %vm403, %v400
    // Predicated region
    $region18: #{tpu_custom_call.1} parent=1 // pred_check
      _
    $region19: #{tpu_custom_call.1} parent=1 // pred_check_branch
      %407 = sbr.rel (0) target = $region21
    $region20: #{tpu_custom_call.1} parent=1 // pred_region
      _
    $region21: #{tpu_custom_call.1} parent=1 // pred_fallthru
      _
    // Predicated region
    $region22: #{tpu_custom_call.1} parent=1 // pred_check
      _
    $region23: #{tpu_custom_call.1} parent=1 // pred_check_branch
      %409 = sbr.rel (0) target = $region25
    $region24: #{tpu_custom_call.1} parent=1 // pred_region
      _
    $region25: #{tpu_custom_call.1} parent=1 // pred_fallthru
      _
    %410 = vsyncpa [#allocation3], 1
    %411 = vsyncpa [#allocation5], 1

</llo_original>
